<compile_context>
chip_gen: v5e
topology: v5e:2x2
jax: 0.10.0
libtpu: 0.0.40
codegen_flags: <defaults>
</compile_context>

<pallas_src>
import functools
import math

import jax
import jax.numpy as jnp
from jax.experimental import pallas as pl
from jax.experimental.pallas import tpu as pltpu

AGG_ID = -jnp.inf  # aggregation identity of the max-plus semifield


# --------------------------------------------------------------------------- #
# kernel
# --------------------------------------------------------------------------- #
def _semi_pool_kernel(x_ref, w_ref, o_ref, *, M, N, stride, row_chunk):
    """max over the (M, N) window of (x + w), one B*C lane tile per program.

    x_ref: (s*s, Hs, Ws, bc)  stride-phase-deinterleaved padded input (VMEM)
    w_ref: (M*N, bc)          per-tap, per-lane weights, f32 (VMEM)
    o_ref: (H_out, W_out, bc) output tile (VMEM)
    """
    H_out, W_out, bc = o_ref.shape
    R = row_chunk                      # divides H_out by construction

    @pl.loop(0, H_out // R)
    def _(i):
        r0 = i * R
        acc = jnp.full((R, W_out, bc), AGG_ID, dtype=jnp.float32)
        for m in range(M):
            for n in range(N):
                # phase plane + contiguous offset: tap (m, n) -> plane
                # (m % s, n % s), rows m//s + [r0, r0+R), cols n//s + [0, W_out)
                phase = (m % stride) * stride + (n % stride)
                patch = x_ref[phase,
                              pl.ds(m // stride + r0, R),
                              pl.ds(n // stride, W_out),
                              :]
                # f32 inputs: astype is a no-op (cast only exists for sub-f32).
                wv = w_ref[m * N + n, :]                    # (bc,) lane vector
                acc = jnp.maximum(acc, patch.astype(jnp.float32) + wv)
        o_ref[pl.ds(r0, R), :, :] = acc.astype(o_ref.dtype)


# --------------------------------------------------------------------------- #
# helpers
# --------------------------------------------------------------------------- #
def _output_and_padding(H, W, M, N, stride, padding, ceil_mode):
    if padding == "valid":
        H_out = (H - M + (stride - 1 if ceil_mode else 0)) // stride + 1
        W_out = (W - N + (stride - 1 if ceil_mode else 0)) // stride + 1
    elif padding == "same":
        H_out = -(H // -stride)
        W_out = -(W // -stride)
    else:
        raise ValueError('Padding must be either "valid" or "same"')
    pad_h = max((H_out - 1) * stride + M - H, 0)
    pad_w = max((W_out - 1) * stride + N - W, 0)
    return H_out, W_out, pad_h, pad_w


def _choose_bc_tile(BC, lane_in_bytes, W_out):
    """Tile size over the fused B*C lane axis (multiple of 128, or full axis).

    Grow while it divides BC, the single-buffered input block stays under
    ~8 MiB (so in+out double-buffered fits v7x's 64 MiB VMEM with headroom),
    and one output row (W_out * tile) stays modest for vreg pressure.
    """
    if BC % 128 != 0:
        return BC
    tile = 128
    while (BC % (tile * 2) == 0
           and lane_in_bytes * tile * 2 <= (8 << 20)
           and W_out * tile * 2 * 4 <= (64 << 10)):
        tile *= 2
    return tile


def _choose_row_chunk(H_out, per_row_elems, budget_elems=8192):
    """Largest divisor of H_out whose accumulator stays within ~8 f32 vregs."""
    best = 1
    for r in range(1, H_out + 1):
        if H_out % r == 0 and r * per_row_elems <= budget_elems:
            best = r
    return best


# --------------------------------------------------------------------------- #
# wrapper
# --------------------------------------------------------------------------- #
def semi_pool2d_learnable(x, weights, *, stride, padding="valid", ceil_mode=False):
    """x: (B, C, H, W); weights: (1, C, M, N). Returns (B, C, H_out, W_out)."""
    B, C, H, W = x.shape
    _, Cw, M, N = weights.shape
    assert Cw == C, "learnable SemiPool2d is depthwise: weight channels == input channels"
    s = int(stride)
    assert s >= 1

    H_out, W_out, pad_h, pad_w = _output_and_padding(H, W, M, N, s, padding, ceil_mode)
    p_t, p_l = pad_h // 2, pad_w // 2
    p_b, p_r = pad_h - p_t, pad_w - p_l
    Hp, Wp = H + pad_h, W + pad_w
    Hs, Ws = -(Hp // -s), -(Wp // -s)               # stride-phase grid extents
    extra_h, extra_w = Hs * s - Hp, Ws * s - Wp     # round plane up to stride multiple
    BC = B * C

    # Layout plumbing (pure XLA): NCHW -> lane-dense (..., B*C), pad with the
    # aggregation identity, and de-interleave by stride phase (space-to-depth)
    # so every kernel tap becomes a contiguous, unit-stride slice.
    xt = jnp.transpose(x, (2, 3, 0, 1)).reshape(H, W, BC)
    xt = jnp.pad(xt, ((p_t, p_b + extra_h), (p_l, p_r + extra_w), (0, 0)),
                 constant_values=AGG_ID)
    x_s2d = (xt.reshape(Hs, s, Ws, s, BC)
               .transpose(1, 3, 0, 2, 4)
               .reshape(s * s, Hs, Ws, BC))

    # Per-tap, per-lane weights: w_lanes[m*N+n, b*C+c] = weights[0, c, m, n]
    w_lanes = jnp.broadcast_to(
        weights[0].reshape(C, M * N).T[:, None, :].astype(jnp.float32),
        (M * N, B, C)).reshape(M * N, BC)

    itemsize = jnp.dtype(x.dtype).itemsize
    bc_tile = _choose_bc_tile(BC, s * s * Hs * Ws * itemsize, W_out)
    n_bc = BC // bc_tile
    row_chunk = _choose_row_chunk(H_out, W_out * bc_tile)

    in_block = s * s * Hs * Ws * bc_tile * itemsize
    w_block = M * N * bc_tile * 4
    out_block = H_out * W_out * bc_tile * itemsize
    vmem_limit = int(min(max(2 * (in_block + w_block + out_block) + (4 << 20),
                             32 << 20), 96 << 20))

    kernel = functools.partial(_semi_pool_kernel, M=M, N=N, stride=s,
                               row_chunk=row_chunk)
    out_t = pl.pallas_call(
        kernel,
        out_shape=jax.ShapeDtypeStruct((H_out, W_out, BC), x.dtype),
        grid=(n_bc,),
        in_specs=[
            pl.BlockSpec((s * s, Hs, Ws, bc_tile), lambda i: (0, 0, 0, i)),
            pl.BlockSpec((M * N, bc_tile), lambda i: (0, i)),
        ],
        out_specs=pl.BlockSpec((H_out, W_out, bc_tile), lambda i: (0, 0, i)),
        compiler_params=pltpu.CompilerParams(
            dimension_semantics=("parallel",),   # megacore / v7x 2-TC sharding
            vmem_limit_bytes=vmem_limit,
        ),
    )(x_s2d, w_lanes)

    return out_t.reshape(H_out, W_out, B, C).transpose(2, 3, 0, 1)


# --------------------------------------------------------------------------- #
# pure-JAX reference (mirrors SemiPool2d._semi_pool with the max-plus semifield)
# --------------------------------------------------------------------------- #
def _reference(x, weights, *, stride, padding="valid", ceil_mode=False):
    B, C, H, W = x.shape
    _, _, M, N = weights.shape
    H_out, W_out, pad_h, pad_w = _output_and_padding(H, W, M, N, stride, padding, ceil_mode)
    p_t, p_l = pad_h // 2, pad_w // 2
    p_b, p_r = pad_h - p_t, pad_w - p_l
    xp = jnp.pad(x, ((0, 0), (0, 0), (p_t, p_b), (p_l, p_r)), constant_values=AGG_ID)
    out = jnp.full((B, C, H_out, W_out), AGG_ID, dtype=jnp.float32)
    for m in range(M):
        for n in range(N):
            patch = xp[:, :, m:m + (H_out - 1) * stride + 1:stride,
                          n:n + (W_out - 1) * stride + 1:stride]
            out = jnp.maximum(out, patch + weights[:, :, m, n][..., None, None])
    return out.astype(x.dtype)


if __name__ == "__main__":
    B, C, H, W = 2, 4, 16, 16
    ks, stride = 3, 2

    key = jax.random.PRNGKey(0)
    kx, kw = jax.random.split(key)
    x = jax.random.normal(kx, (B, C, H, W), dtype=jnp.float32)

    # kaiming_uniform_(a=sqrt(5)) equivalent: bound = 1/sqrt(fan_in)
    fan_in = C * ks * ks
    bound = 1.0 / math.sqrt(fan_in)
    weights = jax.random.uniform(
        kw, (1, C, ks, ks), dtype=jnp.float32, minval=-bound, maxval=bound
    )

    out = jax.block_until_ready(
        semi_pool2d_learnable(x, weights, stride=stride, padding="valid")
    )
    ref = _reference(x, weights, stride=stride, padding="valid")
    assert out.shape == ref.shape == (B, C, (H - ks) // stride + 1, (W - ks) // stride + 1)
    assert jnp.allclose(out, ref, atol=1e-5, rtol=1e-5), "mismatch vs reference ('valid')"

    # 'same' padding path (exercises -inf aggregation-identity padding)
    out_same = jax.block_until_ready(
        semi_pool2d_learnable(x, weights, stride=stride, padding="same")
    )
    ref_same = _reference(x, weights, stride=stride, padding="same")
    assert jnp.allclose(out_same, ref_same, atol=1e-5, rtol=1e-5), "mismatch ('same')"

    # stride=1 path (trivial space-to-depth)
    out_s1 = jax.block_until_ready(
        semi_pool2d_learnable(x, weights, stride=1, padding="valid")
    )
    ref_s1 = _reference(x, weights, stride=1, padding="valid")
    assert jnp.allclose(out_s1, ref_s1, atol=1e-5, rtol=1e-5), "mismatch (stride=1)"

    print("KERNEL_OK")
</pallas_src>

<mosaic_0001>
module attributes {stable_mosaic.version = 11 : i64} {
  func.func @_semi_pool_kernel(%arg0: i32, %arg1: memref<4x8x8x8xf32, #tpu.memory_space<vmem>>, %arg2: memref<9x8xf32, #tpu.memory_space<vmem>>, %arg3: memref<7x7x8xf32, #tpu.memory_space<vmem>>) attributes {dimension_semantics = [#tpu.dimension_semantics<parallel>], iteration_bounds = array<i64: 1>, scalar_prefetch = 0 : i64, scratch_operands = 0 : i64, tpu.core_type = #tpu.core_type<tc>, window_params = [{transform_indices = @transform_0, window_bounds = array<i64: 4, 8, 8, 8>}, {transform_indices = @transform_1, window_bounds = array<i64: 9, 8>}, {transform_indices = @transform_2, window_bounds = array<i64: 7, 7, 8>}]} {
    %c0_i32 = arith.constant 0 : i32
    %c1_i32 = arith.constant 1 : i32
    %0 = arith.muli %c0_i32, %c1_i32 : i32
    %c0_i32_0 = arith.constant 0 : i32
    %1 = arith.addi %c0_i32_0, %0 : i32
    %c7_i32 = arith.constant 7 : i32
    %2 = arith.muli %1, %c7_i32 : i32
    %cst = arith.constant 0xFF800000 : f32
    %3 = vector.broadcast %cst : f32 to vector<7x7x8xf32>
    %c0_i32_1 = arith.constant 0 : i32
    %4 = arith.addi %c0_i32_1, %2 : i32
    %c0 = arith.constant 0 : index
    %5 = arith.index_cast %4 : i32 to index
    %c0_2 = arith.constant 0 : index
    %c0_3 = arith.constant 0 : index
    %6 = vector.load %arg1[%c0, %5, %c0_2, %c0_3] : memref<4x8x8x8xf32, #tpu.memory_space<vmem>>, vector<1x7x7x8xf32>
    %7 = vector.shape_cast %6 : vector<1x7x7x8xf32> to vector<7x7x8xf32>
    %c0_4 = arith.constant 0 : index
    %c0_5 = arith.constant 0 : index
    %8 = vector.load %arg2[%c0_4, %c0_5] : memref<9x8xf32, #tpu.memory_space<vmem>>, vector<1x8xf32>
    %9 = vector.shape_cast %8 : vector<1x8xf32> to vector<8xf32>
    %10 = vector.shape_cast %9 : vector<8xf32> to vector<1x1x8xf32>
    %11 = vector.broadcast %10 : vector<1x1x8xf32> to vector<7x7x8xf32>
    %12 = arith.addf %7, %11 : vector<7x7x8xf32>
    %13 = arith.maximumf %3, %12 : vector<7x7x8xf32>
    %c0_i32_6 = arith.constant 0 : i32
    %14 = arith.addi %c0_i32_6, %2 : i32
    %c1 = arith.constant 1 : index
    %15 = arith.index_cast %14 : i32 to index
    %c0_7 = arith.constant 0 : index
    %c0_8 = arith.constant 0 : index
    %16 = vector.load %arg1[%c1, %15, %c0_7, %c0_8] : memref<4x8x8x8xf32, #tpu.memory_space<vmem>>, vector<1x7x7x8xf32>
    %17 = vector.shape_cast %16 : vector<1x7x7x8xf32> to vector<7x7x8xf32>
    %c1_9 = arith.constant 1 : index
    %c0_10 = arith.constant 0 : index
    %18 = vector.load %arg2[%c1_9, %c0_10] : memref<9x8xf32, #tpu.memory_space<vmem>>, vector<1x8xf32>
    %19 = vector.shape_cast %18 : vector<1x8xf32> to vector<8xf32>
    %20 = vector.shape_cast %19 : vector<8xf32> to vector<1x1x8xf32>
    %21 = vector.broadcast %20 : vector<1x1x8xf32> to vector<7x7x8xf32>
    %22 = arith.addf %17, %21 : vector<7x7x8xf32>
    %23 = arith.maximumf %13, %22 : vector<7x7x8xf32>
    %c0_i32_11 = arith.constant 0 : i32
    %24 = arith.addi %c0_i32_11, %2 : i32
    %c0_12 = arith.constant 0 : index
    %25 = arith.index_cast %24 : i32 to index
    %c1_13 = arith.constant 1 : index
    %c0_14 = arith.constant 0 : index
    %26 = vector.load %arg1[%c0_12, %25, %c1_13, %c0_14] : memref<4x8x8x8xf32, #tpu.memory_space<vmem>>, vector<1x7x7x8xf32>
    %27 = vector.shape_cast %26 : vector<1x7x7x8xf32> to vector<7x7x8xf32>
    %c2 = arith.constant 2 : index
    %c0_15 = arith.constant 0 : index
    %28 = vector.load %arg2[%c2, %c0_15] : memref<9x8xf32, #tpu.memory_space<vmem>>, vector<1x8xf32>
    %29 = vector.shape_cast %28 : vector<1x8xf32> to vector<8xf32>
    %30 = vector.shape_cast %29 : vector<8xf32> to vector<1x1x8xf32>
    %31 = vector.broadcast %30 : vector<1x1x8xf32> to vector<7x7x8xf32>
    %32 = arith.addf %27, %31 : vector<7x7x8xf32>
    %33 = arith.maximumf %23, %32 : vector<7x7x8xf32>
    %c0_i32_16 = arith.constant 0 : i32
    %34 = arith.addi %c0_i32_16, %2 : i32
    %c2_17 = arith.constant 2 : index
    %35 = arith.index_cast %34 : i32 to index
    %c0_18 = arith.constant 0 : index
    %c0_19 = arith.constant 0 : index
    %36 = vector.load %arg1[%c2_17, %35, %c0_18, %c0_19] : memref<4x8x8x8xf32, #tpu.memory_space<vmem>>, vector<1x7x7x8xf32>
    %37 = vector.shape_cast %36 : vector<1x7x7x8xf32> to vector<7x7x8xf32>
    %c3 = arith.constant 3 : index
    %c0_20 = arith.constant 0 : index
    %38 = vector.load %arg2[%c3, %c0_20] : memref<9x8xf32, #tpu.memory_space<vmem>>, vector<1x8xf32>
    %39 = vector.shape_cast %38 : vector<1x8xf32> to vector<8xf32>
    %40 = vector.shape_cast %39 : vector<8xf32> to vector<1x1x8xf32>
    %41 = vector.broadcast %40 : vector<1x1x8xf32> to vector<7x7x8xf32>
    %42 = arith.addf %37, %41 : vector<7x7x8xf32>
    %43 = arith.maximumf %33, %42 : vector<7x7x8xf32>
    %c0_i32_21 = arith.constant 0 : i32
    %44 = arith.addi %c0_i32_21, %2 : i32
    %c3_22 = arith.constant 3 : index
    %45 = arith.index_cast %44 : i32 to index
    %c0_23 = arith.constant 0 : index
    %c0_24 = arith.constant 0 : index
    %46 = vector.load %arg1[%c3_22, %45, %c0_23, %c0_24] : memref<4x8x8x8xf32, #tpu.memory_space<vmem>>, vector<1x7x7x8xf32>
    %47 = vector.shape_cast %46 : vector<1x7x7x8xf32> to vector<7x7x8xf32>
    %c4 = arith.constant 4 : index
    %c0_25 = arith.constant 0 : index
    %48 = vector.load %arg2[%c4, %c0_25] : memref<9x8xf32, #tpu.memory_space<vmem>>, vector<1x8xf32>
    %49 = vector.shape_cast %48 : vector<1x8xf32> to vector<8xf32>
    %50 = vector.shape_cast %49 : vector<8xf32> to vector<1x1x8xf32>
    %51 = vector.broadcast %50 : vector<1x1x8xf32> to vector<7x7x8xf32>
    %52 = arith.addf %47, %51 : vector<7x7x8xf32>
    %53 = arith.maximumf %43, %52 : vector<7x7x8xf32>
    %c0_i32_26 = arith.constant 0 : i32
    %54 = arith.addi %c0_i32_26, %2 : i32
    %c2_27 = arith.constant 2 : index
    %55 = arith.index_cast %54 : i32 to index
    %c1_28 = arith.constant 1 : index
    %c0_29 = arith.constant 0 : index
    %56 = vector.load %arg1[%c2_27, %55, %c1_28, %c0_29] : memref<4x8x8x8xf32, #tpu.memory_space<vmem>>, vector<1x7x7x8xf32>
    %57 = vector.shape_cast %56 : vector<1x7x7x8xf32> to vector<7x7x8xf32>
    %c5 = arith.constant 5 : index
    %c0_30 = arith.constant 0 : index
    %58 = vector.load %arg2[%c5, %c0_30] : memref<9x8xf32, #tpu.memory_space<vmem>>, vector<1x8xf32>
    %59 = vector.shape_cast %58 : vector<1x8xf32> to vector<8xf32>
    %60 = vector.shape_cast %59 : vector<8xf32> to vector<1x1x8xf32>
    %61 = vector.broadcast %60 : vector<1x1x8xf32> to vector<7x7x8xf32>
    %62 = arith.addf %57, %61 : vector<7x7x8xf32>
    %63 = arith.maximumf %53, %62 : vector<7x7x8xf32>
    %c1_i32_31 = arith.constant 1 : i32
    %64 = arith.addi %c1_i32_31, %2 : i32
    %c0_32 = arith.constant 0 : index
    %65 = arith.index_cast %64 : i32 to index
    %c0_33 = arith.constant 0 : index
    %c0_34 = arith.constant 0 : index
    %66 = vector.load %arg1[%c0_32, %65, %c0_33, %c0_34] : memref<4x8x8x8xf32, #tpu.memory_space<vmem>>, vector<1x7x7x8xf32>
    %67 = vector.shape_cast %66 : vector<1x7x7x8xf32> to vector<7x7x8xf32>
    %c6 = arith.constant 6 : index
    %c0_35 = arith.constant 0 : index
    %68 = vector.load %arg2[%c6, %c0_35] : memref<9x8xf32, #tpu.memory_space<vmem>>, vector<1x8xf32>
    %69 = vector.shape_cast %68 : vector<1x8xf32> to vector<8xf32>
    %70 = vector.shape_cast %69 : vector<8xf32> to vector<1x1x8xf32>
    %71 = vector.broadcast %70 : vector<1x1x8xf32> to vector<7x7x8xf32>
    %72 = arith.addf %67, %71 : vector<7x7x8xf32>
    %73 = arith.maximumf %63, %72 : vector<7x7x8xf32>
    %c1_i32_36 = arith.constant 1 : i32
    %74 = arith.addi %c1_i32_36, %2 : i32
    %c1_37 = arith.constant 1 : index
    %75 = arith.index_cast %74 : i32 to index
    %c0_38 = arith.constant 0 : index
    %c0_39 = arith.constant 0 : index
    %76 = vector.load %arg1[%c1_37, %75, %c0_38, %c0_39] : memref<4x8x8x8xf32, #tpu.memory_space<vmem>>, vector<1x7x7x8xf32>
    %77 = vector.shape_cast %76 : vector<1x7x7x8xf32> to vector<7x7x8xf32>
    %c7 = arith.constant 7 : index
    %c0_40 = arith.constant 0 : index
    %78 = vector.load %arg2[%c7, %c0_40] : memref<9x8xf32, #tpu.memory_space<vmem>>, vector<1x8xf32>
    %79 = vector.shape_cast %78 : vector<1x8xf32> to vector<8xf32>
    %80 = vector.shape_cast %79 : vector<8xf32> to vector<1x1x8xf32>
    %81 = vector.broadcast %80 : vector<1x1x8xf32> to vector<7x7x8xf32>
    %82 = arith.addf %77, %81 : vector<7x7x8xf32>
    %83 = arith.maximumf %73, %82 : vector<7x7x8xf32>
    %c1_i32_41 = arith.constant 1 : i32
    %84 = arith.addi %c1_i32_41, %2 : i32
    %c0_42 = arith.constant 0 : index
    %85 = arith.index_cast %84 : i32 to index
    %c1_43 = arith.constant 1 : index
    %c0_44 = arith.constant 0 : index
    %86 = vector.load %arg1[%c0_42, %85, %c1_43, %c0_44] : memref<4x8x8x8xf32, #tpu.memory_space<vmem>>, vector<1x7x7x8xf32>
    %87 = vector.shape_cast %86 : vector<1x7x7x8xf32> to vector<7x7x8xf32>
    %c8 = arith.constant 8 : index
    %c0_45 = arith.constant 0 : index
    %88 = vector.load %arg2[%c8, %c0_45] : memref<9x8xf32, #tpu.memory_space<vmem>>, vector<1x8xf32>
    %89 = vector.shape_cast %88 : vector<1x8xf32> to vector<8xf32>
    %90 = vector.shape_cast %89 : vector<8xf32> to vector<1x1x8xf32>
    %91 = vector.broadcast %90 : vector<1x1x8xf32> to vector<7x7x8xf32>
    %92 = arith.addf %87, %91 : vector<7x7x8xf32>
    %93 = arith.maximumf %83, %92 : vector<7x7x8xf32>
    %94 = arith.index_cast %2 : i32 to index
    %c0_46 = arith.constant 0 : index
    %c0_47 = arith.constant 0 : index
    %95 = vector.load %arg3[%94, %c0_46, %c0_47] : memref<7x7x8xf32, #tpu.memory_space<vmem>>, vector<7x7x8xf32>
    tpu.vector_store %arg3[%94, %c0_46, %c0_47], %93 {strides = array<i32>} : memref<7x7x8xf32, #tpu.memory_space<vmem>>, vector<7x7x8xf32>,
    %c1_i32_48 = arith.constant 1 : i32
    return
  }
  func.func @transform_0(%arg0: i32) -> (i32, i32, i32, i32) {
    %c0_i32 = arith.constant 0 : i32
    %c0_i32_0 = arith.constant 0 : i32
    %c0_i32_1 = arith.constant 0 : i32
    %c0_i32_2 = arith.constant 0 : i32
    return %c0_i32, %c0_i32_0, %c0_i32_1, %arg0 : i32, i32, i32, i32
  }
  func.func @transform_1(%arg0: i32) -> (i32, i32) {
    %c0_i32 = arith.constant 0 : i32
    %c0_i32_0 = arith.constant 0 : i32
    return %c0_i32, %arg0 : i32, i32
  }
  func.func @transform_2(%arg0: i32) -> (i32, i32, i32) {
    %c0_i32 = arith.constant 0 : i32
    %c0_i32_0 = arith.constant 0 : i32
    %c0_i32_1 = arith.constant 0 : i32
    return %c0_i32, %c0_i32_0, %arg0 : i32, i32, i32
  }
}

</mosaic_0001>

<llo_original>
// kernel: tpu_custom_call.1
$region0: #{tpu_custom_call.1}
  #allocation0 [shape = 'u32[]', space=smem, size = 0x4, offset = 0x4, fixed_abs, tag = 'smem constant byte address 0x4 - core index']
  #allocation1 [shape = 'u32[72,128]{1,0:T(1,128)}', space=vmem, size = 0x9000, scoped, tag = 'internal scratch']
  %s0 = inlined_call_operand.hbm [shape: f32[4,8,8,8], index: 0, kind: input, shape index: {}]
  %s1 = inlined_call_operand.vmem [shape: f32[9,8], index: 1, kind: input, shape index: {}]
  %s2 = inlined_call_operand.hbm [shape: f32[7,7,8], index: 2, kind: output, shape index: {}]
  %s3 = sld [smem:[#allocation0]]
  $region22: #{tpu_custom_call.1} parent=0
    _
  %s5 = ssub.s32 1, %s3
  %s6 = scalar_select 0, %s5, %s3
  $region1: #{tpu_custom_call.1} parent=0
    #allocation2 [shape = 'u8[131072]{0}', space=vmem, size = 0x20000, scoped, tag = 'input window, operand 0, single buffered']
    #allocation3 [shape = 's32[1]{0}', space=sflag, size = 0x4, scoped, tag = 'scoped memory for tpu_custom_call.1']
    #allocation4 [shape = 's32[1]{0}', space=sflag, size = 0x4, scoped, tag = 'scoped memory for tpu_custom_call.1']
    #allocation5 [shape = 'u8[28672]{0}', space=vmem, size = 0x7000, scoped, tag = 'output window, operand 0, single buffered']
    %7 = vsyncpa [#allocation3], 0
    %8 = vsyncpa [#allocation4], 0
    // Predicated region
    $region2: #{tpu_custom_call.1} parent=1 // pred_check
      _
    $region3: #{tpu_custom_call.1} parent=1 // pred_check_branch
      %10 = sbr.rel (0) target = $region5
    $region4: #{tpu_custom_call.1} parent=1 // pred_region
      %12 = vsyncadd [#allocation3], 0
      %s13 = sshll.u32 %s0, 4
      %s14 = int_to_ptr.hbm [resolvable:$true] %s13
      %s15 = sshll.u32 [#allocation2], 4
      %s16 = int_to_ptr.vmem [resolvable:$true] %s15
      %21 = dma.hbm_to_vmem [thread:$0]  %s14, 4096, %s16, [#allocation3], 128, 128, 8
    $region5: #{tpu_custom_call.1} parent=1 // pred_fallthru
      _
    // Predicated region
    $region6: #{tpu_custom_call.1} parent=1 // pred_check
      _
    $region7: #{tpu_custom_call.1} parent=1 // pred_check_branch
      %23 = sbr.rel (0) target = $region9
    $region8: #{tpu_custom_call.1} parent=1 // pred_region
      _
    $region9: #{tpu_custom_call.1} parent=1 // pred_fallthru
      _
    // Predicated region
    $region10: #{tpu_custom_call.1} parent=1 // pred_check
      _
    $region11: #{tpu_custom_call.1} parent=1 // pred_check_branch
      %25 = sbr.rel (0) target = $region13
    $region12: #{tpu_custom_call.1} parent=1 // pred_region
      %27 = dma.done [#allocation3], 4096
    $region13: #{tpu_custom_call.1} parent=1 // pred_fallthru
      _
    %v28 = vld [vmem:[#allocation2] sm:$0x7f]
    %v29 = vld [vmem:[#allocation2 + $0x8] sm:$0x7f]
    %v30 = vld [vmem:[#allocation2 + $0x10] sm:$0x7f]
    %v31 = vld [vmem:[#allocation2 + $0x18] sm:$0x7f]
    %v32 = vld [vmem:[#allocation2 + $0x20] sm:$0x7f]
    %v33 = vld [vmem:[#allocation2 + $0x28] sm:$0x7f]
    %v34 = vld [vmem:[#allocation2 + $0x30] sm:$0x7f]
    %v35 = vld [vmem:[%s1] sm:$0x1]
    %v36 = vperm.slane %v35, 0
    %v37 = vadd.f32 %v28, %v36
    %v38 = vadd.f32 %v29, %v36
    %v39 = vadd.f32 %v30, %v36
    %v40 = vadd.f32 %v31, %v36
    %v41 = vadd.f32 %v32, %v36
    %v42 = vadd.f32 %v33, %v36
    %v43 = vadd.f32 %v34, %v36
    %s44 = scalar_lea.vmem [#allocation2], 64
    %v45 = vld [vmem:[%s44] sm:$0x7f]
    %v46 = vld [vmem:[%s44 + $0x8] sm:$0x7f]
    %v47 = vld [vmem:[%s44 + $0x10] sm:$0x7f]
    %v48 = vld [vmem:[%s44 + $0x18] sm:$0x7f]
    %v49 = vld [vmem:[%s44 + $0x20] sm:$0x7f]
    %v50 = vld [vmem:[%s44 + $0x28] sm:$0x7f]
    %v51 = vld [vmem:[%s44 + $0x30] sm:$0x7f]
    %v52 = vld [vmem:[%s1 + $0x1] sm:$0x1]
    %v53 = vperm.slane %v52, 0
    %v54 = vadd.f32 %v45, %v53
    %v55 = vadd.f32 %v46, %v53
    %v56 = vadd.f32 %v47, %v53
    %v57 = vadd.f32 %v48, %v53
    %v58 = vadd.f32 %v49, %v53
    %v59 = vadd.f32 %v50, %v53
    %v60 = vadd.f32 %v51, %v53
    %v61 = vmax.f32 %v37, %v54
    %v62 = vmax.f32 %v38, %v55
    %v63 = vmax.f32 %v39, %v56
    %v64 = vmax.f32 %v40, %v57
    %v65 = vmax.f32 %v41, %v58
    %v66 = vmax.f32 %v42, %v59
    %v67 = vmax.f32 %v43, %v60
    %v68 = vld [vmem:[#allocation2 + $0x1] sm:$0x7f]
    %v69 = vld [vmem:[#allocation2 + $0x9] sm:$0x7f]
    %v70 = vld [vmem:[#allocation2 + $0x11] sm:$0x7f]
    %v71 = vld [vmem:[#allocation2 + $0x19] sm:$0x7f]
    %v72 = vld [vmem:[#allocation2 + $0x21] sm:$0x7f]
    %v73 = vld [vmem:[#allocation2 + $0x29] sm:$0x7f]
    %v74 = vld [vmem:[#allocation2 + $0x31] sm:$0x7f]
    %v75 = vld [vmem:[%s1 + $0x2] sm:$0x1]
    %v76 = vperm.slane %v75, 0
    %v77 = vadd.f32 %v68, %v76
    %v78 = vadd.f32 %v69, %v76
    %v79 = vadd.f32 %v70, %v76
    %v80 = vadd.f32 %v71, %v76
    %v81 = vadd.f32 %v72, %v76
    %v82 = vadd.f32 %v73, %v76
    %v83 = vadd.f32 %v74, %v76
    %v84 = vmax.f32 %v61, %v77
    %v85 = vmax.f32 %v62, %v78
    %v86 = vmax.f32 %v63, %v79
    %v87 = vmax.f32 %v64, %v80
    %v88 = vmax.f32 %v65, %v81
    %v89 = vmax.f32 %v66, %v82
    %v90 = vmax.f32 %v67, %v83
    %s91 = scalar_lea.vmem [#allocation2], 128
    %v92 = vld [vmem:[%s91] sm:$0x7f]
    %v93 = vld [vmem:[%s91 + $0x8] sm:$0x7f]
    %v94 = vld [vmem:[%s91 + $0x10] sm:$0x7f]
    %v95 = vld [vmem:[%s91 + $0x18] sm:$0x7f]
    %v96 = vld [vmem:[%s91 + $0x20] sm:$0x7f]
    %v97 = vld [vmem:[%s91 + $0x28] sm:$0x7f]
    %v98 = vld [vmem:[%s91 + $0x30] sm:$0x7f]
    %v99 = vld [vmem:[%s1 + $0x3] sm:$0x1]
    %v100 = vperm.slane %v99, 0
    %v101 = vadd.f32 %v92, %v100
    %v102 = vadd.f32 %v93, %v100
    %v103 = vadd.f32 %v94, %v100
    %v104 = vadd.f32 %v95, %v100
    %v105 = vadd.f32 %v96, %v100
    %v106 = vadd.f32 %v97, %v100
    %v107 = vadd.f32 %v98, %v100
    %v108 = vmax.f32 %v84, %v101
    %v109 = vmax.f32 %v85, %v102
    %v110 = vmax.f32 %v86, %v103
    %v111 = vmax.f32 %v87, %v104
    %v112 = vmax.f32 %v88, %v105
    %v113 = vmax.f32 %v89, %v106
    %v114 = vmax.f32 %v90, %v107
    %s115 = scalar_lea.vmem [#allocation2], 192
    %v116 = vld [vmem:[%s115] sm:$0x7f]
    %v117 = vld [vmem:[%s115 + $0x8] sm:$0x7f]
    %v118 = vld [vmem:[%s115 + $0x10] sm:$0x7f]
    %v119 = vld [vmem:[%s115 + $0x18] sm:$0x7f]
    %v120 = vld [vmem:[%s115 + $0x20] sm:$0x7f]
    %v121 = vld [vmem:[%s115 + $0x28] sm:$0x7f]
    %v122 = vld [vmem:[%s115 + $0x30] sm:$0x7f]
    %v123 = vld [vmem:[%s1 + $0x4] sm:$0x1]
    %v124 = vperm.slane %v123, 0
    %v125 = vadd.f32 %v116, %v124
    %v126 = vadd.f32 %v117, %v124
    %v127 = vadd.f32 %v118, %v124
    %v128 = vadd.f32 %v119, %v124
    %v129 = vadd.f32 %v120, %v124
    %v130 = vadd.f32 %v121, %v124
    %v131 = vadd.f32 %v122, %v124
    %v132 = vmax.f32 %v108, %v125
    %v133 = vmax.f32 %v109, %v126
    %v134 = vmax.f32 %v110, %v127
    %v135 = vmax.f32 %v111, %v128
    %v136 = vmax.f32 %v112, %v129
    %v137 = vmax.f32 %v113, %v130
    %v138 = vmax.f32 %v114, %v131
    %v139 = vld [vmem:[%s91 + $0x1] sm:$0x7f]
    %v140 = vld [vmem:[%s91 + $0x9] sm:$0x7f]
    %v141 = vld [vmem:[%s91 + $0x11] sm:$0x7f]
    %v142 = vld [vmem:[%s91 + $0x19] sm:$0x7f]
    %v143 = vld [vmem:[%s91 + $0x21] sm:$0x7f]
    %v144 = vld [vmem:[%s91 + $0x29] sm:$0x7f]
    %v145 = vld [vmem:[%s91 + $0x31] sm:$0x7f]
    %v146 = vld [vmem:[%s1 + $0x5] sm:$0x1]
    %v147 = vperm.slane %v146, 0
    %v148 = vadd.f32 %v139, %v147
    %v149 = vadd.f32 %v140, %v147
    %v150 = vadd.f32 %v141, %v147
    %v151 = vadd.f32 %v142, %v147
    %v152 = vadd.f32 %v143, %v147
    %v153 = vadd.f32 %v144, %v147
    %v154 = vadd.f32 %v145, %v147
    %v155 = vmax.f32 %v132, %v148
    %v156 = vmax.f32 %v133, %v149
    %v157 = vmax.f32 %v134, %v150
    %v158 = vmax.f32 %v135, %v151
    %v159 = vmax.f32 %v136, %v152
    %v160 = vmax.f32 %v137, %v153
    %v161 = vmax.f32 %v138, %v154
    %s162 = scalar_lea.vmem [#allocation2], 8
    %v163 = vld [vmem:[%s162] sm:$0x7f]
    %v164 = vld [vmem:[%s162 + $0x8] sm:$0x7f]
    %v165 = vld [vmem:[%s162 + $0x10] sm:$0x7f]
    %v166 = vld [vmem:[%s162 + $0x18] sm:$0x7f]
    %v167 = vld [vmem:[%s162 + $0x20] sm:$0x7f]
    %v168 = vld [vmem:[%s162 + $0x28] sm:$0x7f]
    %v169 = vld [vmem:[%s162 + $0x30] sm:$0x7f]
    %v170 = vld [vmem:[%s1 + $0x6] sm:$0x1]
    %v171 = vperm.slane %v170, 0
    %v172 = vadd.f32 %v163, %v171
    %v173 = vadd.f32 %v164, %v171
    %v174 = vadd.f32 %v165, %v171
    %v175 = vadd.f32 %v166, %v171
    %v176 = vadd.f32 %v167, %v171
    %v177 = vadd.f32 %v168, %v171
    %v178 = vadd.f32 %v169, %v171
    %v179 = vmax.f32 %v155, %v172
    %v180 = vmax.f32 %v156, %v173
    %v181 = vmax.f32 %v157, %v174
    %v182 = vmax.f32 %v158, %v175
    %v183 = vmax.f32 %v159, %v176
    %v184 = vmax.f32 %v160, %v177
    %v185 = vmax.f32 %v161, %v178
    %s186 = scalar_lea.vmem [#allocation2], 72
    %v187 = vld [vmem:[%s186] sm:$0x7f]
    %v188 = vld [vmem:[%s186 + $0x8] sm:$0x7f]
    %v189 = vld [vmem:[%s186 + $0x10] sm:$0x7f]
    %v190 = vld [vmem:[%s186 + $0x18] sm:$0x7f]
    %v191 = vld [vmem:[%s186 + $0x20] sm:$0x7f]
    %v192 = vld [vmem:[%s186 + $0x28] sm:$0x7f]
    %v193 = vld [vmem:[%s186 + $0x30] sm:$0x7f]
    %v194 = vld [vmem:[%s1 + $0x7] sm:$0x1]
    %v195 = vperm.slane %v194, 0
    %v196 = vadd.f32 %v187, %v195
    %v197 = vadd.f32 %v188, %v195
    %v198 = vadd.f32 %v189, %v195
    %v199 = vadd.f32 %v190, %v195
    %v200 = vadd.f32 %v191, %v195
    %v201 = vadd.f32 %v192, %v195
    %v202 = vadd.f32 %v193, %v195
    %v203 = vmax.f32 %v179, %v196
    %v204 = vmax.f32 %v180, %v197
    %v205 = vmax.f32 %v181, %v198
    %v206 = vmax.f32 %v182, %v199
    %v207 = vmax.f32 %v183, %v200
    %v208 = vmax.f32 %v184, %v201
    %v209 = vmax.f32 %v185, %v202
    %v210 = vld [vmem:[%s162 + $0x1] sm:$0x7f]
    %v211 = vld [vmem:[%s162 + $0x9] sm:$0x7f]
    %v212 = vld [vmem:[%s162 + $0x11] sm:$0x7f]
    %v213 = vld [vmem:[%s162 + $0x19] sm:$0x7f]
    %v214 = vld [vmem:[%s162 + $0x21] sm:$0x7f]
    %v215 = vld [vmem:[%s162 + $0x29] sm:$0x7f]
    %v216 = vld [vmem:[%s162 + $0x31] sm:$0x7f]
    %v217 = vld [vmem:[%s1 + $0x8] sm:$0x1]
    %v218 = vperm.slane %v217, 0
    %v219 = vadd.f32 %v210, %v218
    %v220 = vadd.f32 %v211, %v218
    %v221 = vadd.f32 %v212, %v218
    %v222 = vadd.f32 %v213, %v218
    %v223 = vadd.f32 %v214, %v218
    %v224 = vadd.f32 %v215, %v218
    %v225 = vadd.f32 %v216, %v218
    %v226 = vmax.f32 %v203, %v219
    %v227 = vmax.f32 %v204, %v220
    %v228 = vmax.f32 %v205, %v221
    %v229 = vmax.f32 %v206, %v222
    %v230 = vmax.f32 %v207, %v223
    %v231 = vmax.f32 %v208, %v224
    %v232 = vmax.f32 %v209, %v225
    %vm233 = vcmask 63488
    %234 = vst.msk [vmem:[#allocation5] sm:$0x7f] %vm233, %v226
    %235 = vst.msk [vmem:[#allocation5 + $0x8] sm:$0x7f] %vm233, %v227
    %236 = vst.msk [vmem:[#allocation5 + $0x10] sm:$0x7f] %vm233, %v228
    %237 = vst.msk [vmem:[#allocation5 + $0x18] sm:$0x7f] %vm233, %v229
    %238 = vst.msk [vmem:[#allocation5 + $0x20] sm:$0x7f] %vm233, %v230
    %239 = vst.msk [vmem:[#allocation5 + $0x28] sm:$0x7f] %vm233, %v231
    %240 = vst.msk [vmem:[#allocation5 + $0x30] sm:$0x7f] %vm233, %v232
    // Predicated region
    $region14: #{tpu_custom_call.1} parent=1 // pred_check
      _
    $region15: #{tpu_custom_call.1} parent=1 // pred_check_branch
      %242 = sbr.rel (0) target = $region17
    $region16: #{tpu_custom_call.1} parent=1 // pred_region
      %244 = vsyncadd [#allocation4], 0
      %s245 = sshll.u32 [#allocation5], 4
      %s246 = int_to_ptr.vmem [resolvable:$true] %s245
      %s247 = sshll.u32 %s2, 4
      %s248 = int_to_ptr.hbm [resolvable:$true] %s247
      %253 = dma.vmem_to_hbm [thread:$0]  %s246, 896, %s248, [#allocation4], 128, 128, 8
    $region17: #{tpu_custom_call.1} parent=1 // pred_fallthru
      _
    // Predicated region
    $region18: #{tpu_custom_call.1} parent=1 // pred_check
      _
    $region19: #{tpu_custom_call.1} parent=1 // pred_check_branch
      %255 = sbr.rel (0) target = $region21
    $region20: #{tpu_custom_call.1} parent=1 // pred_region
      %257 = dma.done [#allocation4], 896
    $region21: #{tpu_custom_call.1} parent=1 // pred_fallthru
      _
    %258 = vsyncpa [#allocation3], 1
    %259 = vsyncpa [#allocation4], 1

</llo_original>
